<compile_context>
chip_gen: v7x
topology: tpu7x:2x2x1
jax: 0.10.0
libtpu: 0.0.40
codegen_flags: <defaults>
</compile_context>

<pallas_src>
import math
import functools

import jax
import jax.numpy as jnp
from jax.experimental import pallas as pl
from jax.experimental.pallas import tpu as pltpu


# TODO(synk): PyTorch F.gelu defaults to the exact erf-based GELU; Mosaic has no
# erf lowering, so we use the tanh approximation (max abs deviation ~1e-3).
def _gelu_tanh(x):
    c = math.sqrt(2.0 / math.pi)
    return 0.5 * x * (1.0 + jnp.tanh(c * (x + 0.044715 * x * x * x)))


def _round_up(x: int, m: int) -> int:
    return ((x + m - 1) // m) * m


def _choose_tile_m(M: int, K: int, out_dim: int,
                   dtype_bytes: int = 4, target_bytes: int = 2 << 20) -> int:
    """Rows per grid step: ~2 MiB of (x-block + out-block), multiple of 8, <=512."""
    bytes_per_row = max((K + out_dim) * dtype_bytes, 1)
    rows = max(8, (target_bytes // bytes_per_row) // 8 * 8)
    return max(8, min(_round_up(M, 8), rows, 512))


def _fan_kernel(x_ref, w_ref, b_ref, o_ref, *, p_dim: int):
    # x_ref: (tm, K); w_ref: (K, p_dim + g_dim); b_ref: (1, p_dim + g_dim).
    x = x_ref[...]
    # Single fused MXU matmul for both linear layers (shared LHS).
    pg = jnp.dot(x, w_ref[...], preferred_element_type=jnp.float32) + b_ref[...]
    p = pg[:, :p_dim]
    g = _gelu_tanh(pg[:, p_dim:])
    out = jnp.concatenate([jnp.cos(p), jnp.sin(p), g], axis=-1)
    o_ref[...] = out.astype(o_ref.dtype)


def fan_layer_forward(src, wp, bp, wg, bg):
    """FANLayer forward.

    src: (..., input_dim) float32
    wp:  (input_dim, p_dim)     bp: (p_dim,)
    wg:  (input_dim, g_dim)     bg: (g_dim,)
    returns (..., 2*p_dim + g_dim)
    """
    *lead, K = src.shape
    p_dim = wp.shape[1]
    g_dim = wg.shape[1]
    out_dim = 2 * p_dim + g_dim
    pg_dim = p_dim + g_dim

    M = 1
    for d in lead:
        M *= d
    x2 = src.reshape(M, K)

    tm = _choose_tile_m(M, K, out_dim)
    M_pad = _round_up(M, tm)
    if M_pad != M:
        x2 = jnp.pad(x2, ((0, M_pad - M), (0, 0)))

    # Fuse the two linear layers into one weight/bias (done once, outside kernel).
    w = jnp.concatenate([wp, wg], axis=1)                     # (K, p_dim + g_dim)
    b = jnp.concatenate([bp, bg], axis=0).reshape(1, pg_dim)  # (1, p_dim + g_dim)

    kernel = functools.partial(_fan_kernel, p_dim=p_dim)

    grid_spec = pltpu.PrefetchScalarGridSpec(
        num_scalar_prefetch=0,
        grid=(M_pad // tm,),
        in_specs=[
            pl.BlockSpec((tm, K), lambda i: (i, 0)),        # x tile (streamed)
            pl.BlockSpec((K, pg_dim), lambda i: (0, 0)),    # fused W (resident)
            pl.BlockSpec((1, pg_dim), lambda i: (0, 0)),    # fused b (resident)
        ],
        out_specs=pl.BlockSpec((tm, out_dim), lambda i: (i, 0)),
    )

    out = pl.pallas_call(
        kernel,
        out_shape=jax.ShapeDtypeStruct((M_pad, out_dim), src.dtype),
        grid_spec=grid_spec,
        compiler_params=pltpu.CompilerParams(
            dimension_semantics=("parallel",)),
    )(x2, w, b)

    return out[:M].reshape(*lead, out_dim)


if __name__ == "__main__":
    # Small shapes consistent with the module: batch=2, seq=8, input_dim=32,
    # output_dim=64, p_ratio=0.25  ->  p_dim=16, g_dim=32.
    input_dim, output_dim, p_ratio = 32, 64, 0.25
    batch, seq = 2, 8
    p_dim = int(output_dim * p_ratio)
    g_dim = output_dim - 2 * p_dim

    key = jax.random.PRNGKey(0)
    kx, kwp, kbp, kwg, kbg = jax.random.split(key, 5)
    src = jax.random.normal(kx, (batch, seq, input_dim), dtype=jnp.float32)
    wp = jax.random.normal(kwp, (input_dim, p_dim), jnp.float32) / math.sqrt(input_dim)
    bp = 0.01 * jax.random.normal(kbp, (p_dim,), jnp.float32)
    wg = jax.random.normal(kwg, (input_dim, g_dim), jnp.float32) / math.sqrt(input_dim)
    bg = 0.01 * jax.random.normal(kbg, (g_dim,), jnp.float32)

    out = fan_layer_forward(src, wp, bp, wg, bg)
    out = jax.block_until_ready(out)

    # Pure-JAX reference (same math as the PyTorch forward, tanh-GELU).
    x2 = src.reshape(-1, input_dim)
    p_ref = x2 @ wp + bp
    g_ref = _gelu_tanh(x2 @ wg + bg)
    ref = jnp.concatenate([jnp.cos(p_ref), jnp.sin(p_ref), g_ref], axis=-1)
    ref = ref.reshape(batch, seq, output_dim)

    assert out.shape == (batch, seq, output_dim), f"bad shape {out.shape}"
    assert jnp.allclose(out, ref, atol=1e-3, rtol=1e-3), "mismatch vs reference"
    print("KERNEL_OK")
</pallas_src>

<mosaic_0001>
module attributes {stable_mosaic.version = 11 : i64} {
  func.func @_fan_kernel(%arg0: i32, %arg1: memref<16x32xf32, #tpu.memory_space<vmem>>, %arg2: memref<32x48xf32, #tpu.memory_space<vmem>>, %arg3: memref<1x48xf32, #tpu.memory_space<vmem>>, %arg4: memref<16x64xf32, #tpu.memory_space<vmem>>) attributes {dimension_semantics = [#tpu.dimension_semantics<parallel>], iteration_bounds = array<i64: 1>, scalar_prefetch = 0 : i64, scratch_operands = 0 : i64, tpu.core_type = #tpu.core_type<tc>, window_params = [{transform_indices = @transform_0, window_bounds = array<i64: 16, 32>}, {pipeline_mode = #tpu.pipeline_mode<synchronous>, transform_indices = @transform_1, window_bounds = array<i64: 32, 48>}, {pipeline_mode = #tpu.pipeline_mode<synchronous>, transform_indices = @transform_2, window_bounds = array<i64: 1, 48>}, {transform_indices = @transform_3, window_bounds = array<i64: 16, 64>}]} {
    %c0 = arith.constant 0 : index
    %c0_0 = arith.constant 0 : index
    %0 = vector.load %arg1[%c0, %c0_0] : memref<16x32xf32, #tpu.memory_space<vmem>>, vector<16x32xf32>
    %c0_1 = arith.constant 0 : index
    %c0_2 = arith.constant 0 : index
    %1 = vector.load %arg2[%c0_1, %c0_2] : memref<32x48xf32, #tpu.memory_space<vmem>>, vector<32x48xf32>
    %cst = arith.constant dense<0.000000e+00> : vector<16x48xf32>
    %2 = tpu.matmul %0, %1, %cst {dimension_numbers = #tpu.dot_dimension_numbers<[1], [0], [0], [1], [0, 0, 1, 1], [], []>} : vector<16x32xf32>, vector<32x48xf32>, vector<16x48xf32> -> vector<16x48xf32>
    %c0_3 = arith.constant 0 : index
    %c0_4 = arith.constant 0 : index
    %3 = vector.load %arg3[%c0_3, %c0_4] : memref<1x48xf32, #tpu.memory_space<vmem>>, vector<1x48xf32>
    %4 = vector.broadcast %3 : vector<1x48xf32> to vector<16x48xf32>
    %5 = arith.addf %2, %4 : vector<16x48xf32>
    %6 = vector.extract_strided_slice %5 {offsets = [0, 0], sizes = [16, 16], strides = [1, 1]} : vector<16x48xf32> to vector<16x16xf32>
    %7 = vector.extract_strided_slice %5 {offsets = [0, 16], sizes = [16, 32], strides = [1, 1]} : vector<16x48xf32> to vector<16x32xf32>
    %cst_5 = arith.constant 5.000000e-01 : f32
    %8 = vector.broadcast %cst_5 : f32 to vector<16x32xf32>
    %9 = arith.mulf %8, %7 : vector<16x32xf32>
    %cst_6 = arith.constant 4.471500e-02 : f32
    %10 = vector.broadcast %cst_6 : f32 to vector<16x32xf32>
    %11 = arith.mulf %10, %7 : vector<16x32xf32>
    %12 = arith.mulf %11, %7 : vector<16x32xf32>
    %13 = arith.mulf %12, %7 : vector<16x32xf32>
    %14 = arith.addf %7, %13 : vector<16x32xf32>
    %cst_7 = arith.constant 0.797884583 : f32
    %15 = vector.broadcast %cst_7 : f32 to vector<16x32xf32>
    %16 = arith.mulf %15, %14 : vector<16x32xf32>
    %17 = math.tanh %16 : vector<16x32xf32>
    %cst_8 = arith.constant 1.000000e+00 : f32
    %18 = vector.broadcast %cst_8 : f32 to vector<16x32xf32>
    %19 = arith.addf %18, %17 : vector<16x32xf32>
    %20 = arith.mulf %9, %19 : vector<16x32xf32>
    %21 = math.cos %6 : vector<16x16xf32>
    %22 = math.sin %6 : vector<16x16xf32>
    %23 = tpu.concatenate %21, %22, %20 in 1 : vector<16x16xf32>, vector<16x16xf32>, vector<16x32xf32> -> vector<16x64xf32>
    %c0_9 = arith.constant 0 : index
    %c0_10 = arith.constant 0 : index
    %24 = vector.load %arg4[%c0_9, %c0_10] : memref<16x64xf32, #tpu.memory_space<vmem>>, vector<16x64xf32>
    tpu.vector_store %arg4[%c0_9, %c0_10], %23 {strides = array<i32>} : memref<16x64xf32, #tpu.memory_space<vmem>>, vector<16x64xf32>,
    return
  }
  func.func @transform_0(%arg0: i32) -> (i32, i32) {
    %c0_i32 = arith.constant 0 : i32
    %c0_i32_0 = arith.constant 0 : i32
    return %arg0, %c0_i32 : i32, i32
  }
  func.func @transform_1(%arg0: i32) -> (i32, i32) {
    %c0_i32 = arith.constant 0 : i32
    %c0_i32_0 = arith.constant 0 : i32
    %c0_i32_1 = arith.constant 0 : i32
    return %c0_i32, %c0_i32_0 : i32, i32
  }
  func.func @transform_2(%arg0: i32) -> (i32, i32) {
    %c0_i32 = arith.constant 0 : i32
    %c0_i32_0 = arith.constant 0 : i32
    %c0_i32_1 = arith.constant 0 : i32
    return %c0_i32, %c0_i32_0 : i32, i32
  }
  func.func @transform_3(%arg0: i32) -> (i32, i32) {
    %c0_i32 = arith.constant 0 : i32
    %c0_i32_0 = arith.constant 0 : i32
    return %arg0, %c0_i32 : i32, i32
  }
}

</mosaic_0001>

<llo_original>
// kernel: tpu_custom_call.1
$region0: #{tpu_custom_call.1}
  #allocation0 [shape = 'u32[]', space=smem, size = 0x4, offset = 0x4, fixed_abs, tag = 'smem constant byte address 0x4 - core index']
  #allocation1 [shape = 'u32[144,128]{1,0:T(1,128)}', space=vmem, size = 0x12000, scoped, tag = 'internal scratch']
  %s0 = inlined_call_operand.hbm [shape: f32[16,32], index: 0, kind: input, shape index: {}]
  %s1 = inlined_call_operand.hbm [shape: f32[32,48], index: 1, kind: input, shape index: {}]
  %s2 = inlined_call_operand.vmem [shape: f32[1,48], index: 2, kind: input, shape index: {}]
  %s3 = inlined_call_operand.hbm [shape: f32[16,64], index: 3, kind: output, shape index: {}]
  %s4 = sld [smem:[#allocation0]]
  $region30: #{tpu_custom_call.1} parent=0
    _
  %s6 = ssub.s32 1, %s4
  %s7 = scalar_select 0, %s6, %s4
  $region1: #{tpu_custom_call.1} parent=0
    #allocation2 [shape = 'u8[8192]{0}', space=vmem, size = 0x2000, scoped, tag = 'input window, operand 0, single buffered']
    #allocation3 [shape = 's32[1]{0}', space=sflag, size = 0x4, scoped, tag = 'scoped memory for tpu_custom_call.1']
    #allocation4 [shape = 's32[1]{0}', space=sflag, size = 0x4, scoped, tag = 'scoped memory for tpu_custom_call.1']
    #allocation5 [shape = 'u8[16384]{0}', space=vmem, size = 0x4000, scoped, tag = 'input window, operand 1, single buffered']
    #allocation6 [shape = 's32[1]{0}', space=sflag, size = 0x4, scoped, tag = 'scoped memory for tpu_custom_call.1']
    #allocation7 [shape = 'u8[8192]{0}', space=vmem, size = 0x2000, scoped, tag = 'output window, operand 0, single buffered']
    %8 = vsyncpa [#allocation3], 0
    %9 = vsyncpa [#allocation6], 0
    %10 = vsyncpa [#allocation4], 0
    // Predicated region
    $region2: #{tpu_custom_call.1} parent=1 // pred_check
      _
    $region3: #{tpu_custom_call.1} parent=1 // pred_check_branch
      %12 = sbr.rel (0) target = $region5
    $region4: #{tpu_custom_call.1} parent=1 // pred_region
      %s14 = ssub.s32 256, 256
      %15 = vsyncadd [#allocation3], %s14
      %s16 = sshll.u32 [#allocation2], 4
      %s17 = int_to_ptr.vmem [resolvable:$true] %s16
      %22 = dma.hbm_to_vmem [thread:$0]  %s0, 256, %s17, [#allocation3], 128, 128, 8
    $region5: #{tpu_custom_call.1} parent=1 // pred_fallthru
      _
    // Predicated region
    $region6: #{tpu_custom_call.1} parent=1 // pred_check
      _
    $region7: #{tpu_custom_call.1} parent=1 // pred_check_branch
      %24 = sbr.rel (0) target = $region9
    $region8: #{tpu_custom_call.1} parent=1 // pred_region
      %s26 = ssub.s32 512, 512
      %27 = vsyncadd [#allocation6], %s26
      %s28 = sshll.u32 [#allocation5], 4
      %s29 = int_to_ptr.vmem [resolvable:$true] %s28
      %34 = dma.hbm_to_vmem [thread:$0]  %s1, 512, %s29, [#allocation6], 128, 128, 8
    $region9: #{tpu_custom_call.1} parent=1 // pred_fallthru
      _
    // Predicated region
    $region10: #{tpu_custom_call.1} parent=1 // pred_check
      _
    $region11: #{tpu_custom_call.1} parent=1 // pred_check_branch
      %36 = sbr.rel (0) target = $region13
    $region12: #{tpu_custom_call.1} parent=1 // pred_region
      _
    $region13: #{tpu_custom_call.1} parent=1 // pred_fallthru
      _
    // Predicated region
    $region14: #{tpu_custom_call.1} parent=1 // pred_check
      _
    $region15: #{tpu_custom_call.1} parent=1 // pred_check_branch
      %38 = sbr.rel (0) target = $region17
    $region16: #{tpu_custom_call.1} parent=1 // pred_region
      %39 = dma.done [#allocation3], 256
    $region17: #{tpu_custom_call.1} parent=1 // pred_fallthru
      _
    // Predicated region
    $region18: #{tpu_custom_call.1} parent=1 // pred_check
      _
    $region19: #{tpu_custom_call.1} parent=1 // pred_check_branch
      %41 = sbr.rel (0) target = $region21
    $region20: #{tpu_custom_call.1} parent=1 // pred_region
      %42 = dma.done [#allocation6], 512
    $region21: #{tpu_custom_call.1} parent=1 // pred_fallthru
      _
    %v43 = vld [vmem:[#allocation2] sm:$0xff]
    %v44 = vld [vmem:[#allocation2 + $0x8] sm:$0xff]
    %v45 = vld [vmem:[#allocation5] sm:$0xff]
    %v46 = vld [vmem:[#allocation5 + $0x8] sm:$0xff]
    %v47 = vld [vmem:[#allocation5 + $0x10] sm:$0xff]
    %v48 = vld [vmem:[#allocation5 + $0x18] sm:$0xff]
    %v49 = vld [vmem:[%s2] sm:$0x1]
    %v51 = vlaneseq
    %v52 = vshrl.u32 %v51, 7
    %v53 = vsub.s32 0, %v52
    %v54 = vrot.slane %v49, %v53
    %vm56 = vcmask 261120
    %v58 = vsel %vm56, %v43, 0
    %v61 = vsel %vm56, %v44, 0
    %63 = vmatprep.subr.mxu0 0.0
    %64 = vmatpush1.msra.mxu0 %v45
    %65 = vmatprep.subr.mxu0 0.0
    %66 = vmatpush1.msra.mxu0 %v46
    %67 = vmatprep.subr.mxu0 0.0
    %68 = vmatpush1.msra.mxu0 %v47
    %69 = vmatprep.subr.mxu0 0.0
    %70 = vmatpush1.msra.mxu0 %v48
    %71 = vmatprep.subr.mxu0 0.0
    %72 = vmatpush1.msra.mxu0 0.0
    %73 = vmatprep.subr.mxu0 0.0
    %74 = vmatpush1.msra.mxu0 0.0
    %75 = vmatprep.subr.mxu0 0.0
    %76 = vmatpush1.msra.mxu0 0.0
    %77 = vmatprep.subr.mxu0 0.0
    %78 = vmatpush1.msra.mxu0 0.0
    %79 = vmatprep.subr.mxu0 0.0
    %80 = vmatpush1.msra.mxu0 0.0
    %81 = vmatprep.subr.mxu0 0.0
    %82 = vmatpush1.msra.mxu0 0.0
    %83 = vmatprep.subr.mxu0 0.0
    %84 = vmatpush1.msra.mxu0 0.0
    %85 = vmatprep.subr.mxu0 0.0
    %86 = vmatpush1.msra.mxu0 0.0
    %87 = vmatprep.subr.mxu0 0.0
    %88 = vmatpush1.msra.mxu0 0.0
    %89 = vmatprep.subr.mxu0 0.0
    %90 = vmatpush1.msra.mxu0 0.0
    %91 = vmatprep.subr.mxu0 0.0
    %92 = vmatpush1.msra.mxu0 0.0
    %93 = vmatprep.subr.mxu0 0.0
    %94 = vmatpush1.msra.mxu0 0.0
    %95 = vmatprep.subr.mxu0 0.0
    %96 = vmatpush1.msra.mxu0 0.0
    %97 = vmatprep.subr.mxu0 0.0
    %98 = vmatpush1.msra.mxu0 0.0
    %99 = vmatprep.subr.mxu0 0.0
    %100 = vmatpush1.msra.mxu0 0.0
    %101 = vmatprep.subr.mxu0 0.0
    %102 = vmatpush1.msra.mxu0 0.0
    %103 = vmatprep.subr.mxu0 0.0
    %104 = vmatpush1.msra.mxu0 0.0
    %105 = vmatprep.subr.mxu0 0.0
    %106 = vmatpush1.msra.mxu0 0.0
    %107 = vmatprep.subr.mxu0 0.0
    %108 = vmatpush1.msra.mxu0 0.0
    %109 = vmatprep.subr.mxu0 0.0
    %110 = vmatpush1.msra.mxu0 0.0
    %111 = vmatprep.subr.mxu0 0.0
    %112 = vmatpush1.msra.mxu0 0.0
    %113 = vmatprep.subr.mxu0 0.0
    %114 = vmatpush1.msra.mxu0 0.0
    %115 = vmatprep.subr.mxu0 0.0
    %116 = vmatpush1.msra.mxu0 0.0
    %117 = vmatprep.subr.mxu0 0.0
    %118 = vmatpush1.msra.mxu0 0.0
    %119 = vmatprep.subr.mxu0 0.0
    %120 = vmatpush1.msra.mxu0 0.0
    %121 = vmatprep.subr.mxu0 0.0
    %122 = vmatpush1.msra.mxu0 0.0
    %123 = vmatprep.subr.mxu0 0.0
    %124 = vmatpush1.msra.mxu0 0.0
    %125 = vmatprep.subr.mxu0 0.0
    %126 = vmatpush1.msra.mxu0 0.0
    %127 = vmatprep.mubr.f32.mxu0 0.0
    %128 = vmatmul.mubr.f32.gmra.mrb[0].mxu0 %v58
    %v129 = vpop.f32.mrb[0].mxu0
    %v130 = vadd.f32 %v54, %v129
    %v131 = vpop.f32.mrb[0].mxu0
    %132 = vmatprep.mubr.f32.mxu0 0.0
    %133 = vmatmul.mubr.f32.gmra.mrb[0].mxu0 %v61
    %v134 = vpop.f32.mrb[0].mxu0
    %v135 = vadd.f32 %v54, %v134
    %v136 = vpop.f32.mrb[0].mxu0
    %137 = vdwg.mxu0
    %v138 = vmul.f32 %v130, 0.5
    %v139 = vmul.f32 %v135, 0.5
    %v140 = vmul.f32 %v130, 0.044715
    %v141 = vmul.f32 %v135, 0.044715
    %v142 = vmul.f32 %v140, %v130
    %v143 = vmul.f32 %v141, %v135
    %v144 = vmul.f32 %v142, %v130
    %v145 = vmul.f32 %v143, %v135
    %v146 = vadd.f32 %v130, %v144
    %v147 = vadd.f32 %v135, %v145
    %v148 = vmul.f32 %v146, 0.7978846
    %v149 = vmul.f32 %v147, 0.7978846
    %v150 = vtanh.pop %v148
    %v151 = vtanh.pop %v149
    %v152 = vadd.f32 %v150, 1.0
    %v153 = vadd.f32 %v151, 1.0
    %v154 = vmul.f32 %v138, %v152
    %v155 = vmul.f32 %v139, %v153
    %v156 = vand.u32 2147483647, %v130
    %vm157 = vcmp.le.f32.partialorder %v156, 0.7853982
    %vm158 = vcmp.lt.s32.totalorder %v130, 0
    %v159 = vand.u32 %v130, 2139095040
    %v160 = vshrl.u32 %v159, 23
    %v161 = vsub.s32 %v160, 127
    %v162 = vand.u32 2147483647, %v130
    %v163 = vand.u32 %v162, 8388607
    %v164 = vor.u32 %v163, 8388608
    %v165 = vsub.s32 0, %v164
    %v166 = vadd.s32 %v161, 1
    %vm167 = vcmp.gt.s32.totalorder %v166, 0
    %v168 = vsel %vm167, %v166, 0
    %v169 = vshrl.u32 %v168, 5
    %v170 = vand.u32 %v168, 31
    %v171 = vsub.s32 32, %v170
    %v172 = vshrl.u32 683565275, %v171
    %v173 = vshll.u32 683565275, %v170
    %v174 = vshrl.u32 2475754826, %v171
    %v175 = vor.u32 %v173, %v174
    %v176 = vshll.u32 2475754826, %v170
    %v177 = vshrl.u32 2131351028, %v171
    %v178 = vor.u32 %v176, %v177
    %v179 = vshll.u32 2131351028, %v170
    %v180 = vshrl.u32 2102212464, %v171
    %v181 = vor.u32 %v179, %v180
    %v182 = vshll.u32 2102212464, %v170
    %v183 = vshrl.u32 920167782, %v171
    %v184 = vor.u32 %v182, %v183
    %v185 = vshll.u32 920167782, %v170
    %v186 = vshrl.u32 1326507024, %v171
    %v187 = vor.u32 %v185, %v186
    %vm188 = vcmp.lt.s32.totalorder %v169, 1
    %vm189 = vcmp.lt.s32.totalorder %v169, 2
    %vm190 = vcmp.lt.s32.totalorder %v169, 3
    %vm191 = vcmp.lt.s32.totalorder %v169, 4
    %v192 = vsel %vm188, %v172, %v175
    %v193 = vsel %vm191, %v181, 2102212464
    %v194 = vsel %vm190, %v178, %v193
    %v195 = vsel %vm189, %v192, %v194
    %v196 = vsel %vm188, %v175, %v178
    %v197 = vsel %vm191, %v184, 920167782
    %v198 = vsel %vm190, %v181, %v197
    %v199 = vsel %vm189, %v196, %v198
    %v200 = vsel %vm188, %v178, %v181
    %v201 = vsel %vm191, %v187, 1326507024
    %v202 = vsel %vm190, %v184, %v201
    %v203 = vsel %vm189, %v200, %v202
    %v204 = vshll.u32 %v164, 8
    %v205 = vmul.u32.u64.compose %v204, %v203
    %v206 = vextract.low.u32 %v205
    %v207 = vextract.high.u32 %v205
    %v208 = vmul.u32.u64.compose %v204, %v199
    %v209 = vextract.low.u32 %v208
    %v210 = vextract.high.u32 %v208
    %v211 = vmul.u32 %v204, %v195
    %v212 = vadd.s32 %v207, %v209
    %vm213 = vc.u32 %v207, %v209
    %v214 = vadd.s32 %v210, 1
    %v215 = vsel %vm213, %v214, %v210
    %v216 = vadd.s32 %v211, %v215
    %v217 = vadd.s32 %v216, 536870912
    %v218 = vshrl.u32 %v217, 30
    %v219 = vshll.u32 %v218, 30
    %v220 = vsub.s32 %v216, %v219
    %vm221 = vcmp.lt.s32.totalorder %v220, 0
    %v222 = vsub.s32 0, %v220
    %v223 = vsel %vm221, %v222, %v220
    %v224 = vclz %v223
    %v225 = vsub.s32 %v224, 2
    %vm226 = vcmp.gt.s32.totalorder 0, %v225
    %v227 = vsel %vm226, 0, %v225
    %v228 = vsub.s32 32, %v227
    %v229 = vshll.u32 %v220, %v227
    %v230 = vshrl.u32 %v212, %v228
    %v231 = vor.u32 %v229, %v230
    %v232 = vsub.s32 4294967266, %v227
    %v233 = vadd.s32 %v232, 127
    %v234 = vshll.u32 %v233, 23
    %v235 = vor.u32 4788187, %v234
    %v236 = vand.u32 2147483647, %v235
    %v238 = vcvt.s32.f32 %v231
    %v239 = vmul.f32 %v238, %v236
    %v240 = vxor.u32 %v239, 2147483648
    %v241 = vsel %vm158, %v240, %v239
    %v242 = vsub.s32 4, %v218
    %v243 = vsel %vm158, %v242, %v218
    %v244 = vsel %vm157, %v130, %v241
    %v245 = vsel %vm157, 0, %v243
    %v246 = vcosq.f32.pop %v244
    %v247 = vsinq.f32.pop %v244
    %vm248 = vweird.f32 %v130
    %v249 = vand.u32 %v245, 3
    %vm250 = vcmp.lt.s32.totalorder %v249, 2
    %vm251 = vcmp.eq.s32.totalorder %v249, 0
    %v252 = vxor.u32 %v247, 2147483648
    %v253 = vsel %vm251, %v246, %v252
    %vm254 = vcmp.eq.s32.totalorder %v249, 2
    %v255 = vxor.u32 %v246, 2147483648
    %v256 = vsel %vm254, %v255, %v247
    %v257 = vsel %vm250, %v253, %v256
    %v258 = vsel %vm248, nan, %v257
    %v259 = vand.u32 2147483647, %v135
    %vm260 = vcmp.le.f32.partialorder %v259, 0.7853982
    %vm261 = vcmp.lt.s32.totalorder %v135, 0
    %v262 = vand.u32 %v135, 2139095040
    %v263 = vshrl.u32 %v262, 23
    %v264 = vsub.s32 %v263, 127
    %v265 = vand.u32 2147483647, %v135
    %v266 = vand.u32 %v265, 8388607
    %v267 = vor.u32 %v266, 8388608
    %v268 = vsub.s32 0, %v267
    %v269 = vadd.s32 %v264, 1
    %vm270 = vcmp.gt.s32.totalorder %v269, 0
    %v271 = vsel %vm270, %v269, 0
    %v272 = vshrl.u32 %v271, 5
    %v273 = vand.u32 %v271, 31
    %v274 = vsub.s32 32, %v273
    %v275 = vshrl.u32 683565275, %v274
    %v276 = vshll.u32 683565275, %v273
    %v277 = vshrl.u32 2475754826, %v274
    %v278 = vor.u32 %v276, %v277
    %v279 = vshll.u32 2475754826, %v273
    %v280 = vshrl.u32 2131351028, %v274
    %v281 = vor.u32 %v279, %v280
    %v282 = vshll.u32 2131351028, %v273
    %v283 = vshrl.u32 2102212464, %v274
    %v284 = vor.u32 %v282, %v283
    %v285 = vshll.u32 2102212464, %v273
    %v286 = vshrl.u32 920167782, %v274
    %v287 = vor.u32 %v285, %v286
    %v288 = vshll.u32 920167782, %v273
    %v289 = vshrl.u32 1326507024, %v274
    %v290 = vor.u32 %v288, %v289
    %vm291 = vcmp.lt.s32.totalorder %v272, 1
    %vm292 = vcmp.lt.s32.totalorder %v272, 2
    %vm293 = vcmp.lt.s32.totalorder %v272, 3
    %vm294 = vcmp.lt.s32.totalorder %v272, 4
    %v295 = vsel %vm291, %v275, %v278
    %v296 = vsel %vm294, %v284, 2102212464
    %v297 = vsel %vm293, %v281, %v296
    %v298 = vsel %vm292, %v295, %v297
    %v299 = vsel %vm291, %v278, %v281
    %v300 = vsel %vm294, %v287, 920167782
    %v301 = vsel %vm293, %v284, %v300
    %v302 = vsel %vm292, %v299, %v301
    %v303 = vsel %vm291, %v281, %v284
    %v304 = vsel %vm294, %v290, 1326507024
    %v305 = vsel %vm293, %v287, %v304
    %v306 = vsel %vm292, %v303, %v305
    %v307 = vshll.u32 %v267, 8
    %v308 = vmul.u32.u64.compose %v307, %v306
    %v309 = vextract.low.u32 %v308
    %v310 = vextract.high.u32 %v308
    %v311 = vmul.u32.u64.compose %v307, %v302
    %v312 = vextract.low.u32 %v311
    %v313 = vextract.high.u32 %v311
    %v314 = vmul.u32 %v307, %v298
    %v315 = vadd.s32 %v310, %v312
    %vm316 = vc.u32 %v310, %v312
    %v317 = vadd.s32 %v313, 1
    %v318 = vsel %vm316, %v317, %v313
    %v319 = vadd.s32 %v314, %v318
    %v320 = vadd.s32 %v319, 536870912
    %v321 = vshrl.u32 %v320, 30
    %v322 = vshll.u32 %v321, 30
    %v323 = vsub.s32 %v319, %v322
    %vm324 = vcmp.lt.s32.totalorder %v323, 0
    %v325 = vsub.s32 0, %v323
    %v326 = vsel %vm324, %v325, %v323
    %v327 = vclz %v326
    %v328 = vsub.s32 %v327, 2
    %vm329 = vcmp.gt.s32.totalorder 0, %v328
    %v330 = vsel %vm329, 0, %v328
    %v331 = vsub.s32 32, %v330
    %v332 = vshll.u32 %v323, %v330
    %v333 = vshrl.u32 %v315, %v331
    %v334 = vor.u32 %v332, %v333
    %v335 = vsub.s32 4294967266, %v330
    %v336 = vadd.s32 %v335, 127
    %v337 = vshll.u32 %v336, 23
    %v338 = vor.u32 4788187, %v337
    %v339 = vand.u32 2147483647, %v338
    %v341 = vcvt.s32.f32 %v334
    %v342 = vmul.f32 %v341, %v339
    %v343 = vxor.u32 %v342, 2147483648
    %v344 = vsel %vm261, %v343, %v342
    %v345 = vsub.s32 4, %v321
    %v346 = vsel %vm261, %v345, %v321
    %v347 = vsel %vm260, %v135, %v344
    %v348 = vsel %vm260, 0, %v346
    %v349 = vcosq.f32.pop %v347
    %v350 = vsinq.f32.pop %v347
    %vm351 = vweird.f32 %v135
    %v352 = vand.u32 %v348, 3
    %vm353 = vcmp.lt.s32.totalorder %v352, 2
    %vm354 = vcmp.eq.s32.totalorder %v352, 0
    %v355 = vxor.u32 %v350, 2147483648
    %v356 = vsel %vm354, %v349, %v355
    %vm357 = vcmp.eq.s32.totalorder %v352, 2
    %v358 = vxor.u32 %v349, 2147483648
    %v359 = vsel %vm357, %v358, %v350
    %v360 = vsel %vm353, %v356, %v359
    %v361 = vsel %vm351, nan, %v360
    %v362 = vand.u32 2147483647, %v130
    %vm363 = vcmp.le.f32.partialorder %v362, 0.7853982
    %vm364 = vcmp.lt.s32.totalorder %v130, 0
    %v365 = vand.u32 %v130, 2139095040
    %v366 = vshrl.u32 %v365, 23
    %v367 = vsub.s32 %v366, 127
    %v368 = vand.u32 2147483647, %v130
    %v369 = vand.u32 %v368, 8388607
    %v370 = vor.u32 %v369, 8388608
    %v371 = vsub.s32 0, %v370
    %v372 = vadd.s32 %v367, 1
    %vm373 = vcmp.gt.s32.totalorder %v372, 0
    %v374 = vsel %vm373, %v372, 0
    %v375 = vshrl.u32 %v374, 5
    %v376 = vand.u32 %v374, 31
    %v377 = vsub.s32 32, %v376
    %v378 = vshrl.u32 683565275, %v377
    %v379 = vshll.u32 683565275, %v376
    %v380 = vshrl.u32 2475754826, %v377
    %v381 = vor.u32 %v379, %v380
    %v382 = vshll.u32 2475754826, %v376
    %v383 = vshrl.u32 2131351028, %v377
    %v384 = vor.u32 %v382, %v383
    %v385 = vshll.u32 2131351028, %v376
    %v386 = vshrl.u32 2102212464, %v377
    %v387 = vor.u32 %v385, %v386
    %v388 = vshll.u32 2102212464, %v376
    %v389 = vshrl.u32 920167782, %v377
    %v390 = vor.u32 %v388, %v389
    %v391 = vshll.u32 920167782, %v376
    %v392 = vshrl.u32 1326507024, %v377
    %v393 = vor.u32 %v391, %v392
    %vm394 = vcmp.lt.s32.totalorder %v375, 1
    %vm395 = vcmp.lt.s32.totalorder %v375, 2
    %vm396 = vcmp.lt.s32.totalorder %v375, 3
    %vm397 = vcmp.lt.s32.totalorder %v375, 4
    %v398 = vsel %vm394, %v378, %v381
    %v399 = vsel %vm397, %v387, 2102212464
    %v400 = vsel %vm396, %v384, %v399
    %v401 = vsel %vm395, %v398, %v400
    %v402 = vsel %vm394, %v381, %v384
    %v403 = vsel %vm397, %v390, 920167782
    %v404 = vsel %vm396, %v387, %v403
    %v405 = vsel %vm395, %v402, %v404
    %v406 = vsel %vm394, %v384, %v387
    %v407 = vsel %vm397, %v393, 1326507024
    %v408 = vsel %vm396, %v390, %v407
    %v409 = vsel %vm395, %v406, %v408
    %v410 = vshll.u32 %v370, 8
    %v411 = vmul.u32.u64.compose %v410, %v409
    %v412 = vextract.low.u32 %v411
    %v413 = vextract.high.u32 %v411
    %v414 = vmul.u32.u64.compose %v410, %v405
    %v415 = vextract.low.u32 %v414
    %v416 = vextract.high.u32 %v414
    %v417 = vmul.u32 %v410, %v401
    %v418 = vadd.s32 %v413, %v415
    %vm419 = vc.u32 %v413, %v415
    %v420 = vadd.s32 %v416, 1
    %v421 = vsel %vm419, %v420, %v416
    %v422 = vadd.s32 %v417, %v421
    %v423 = vadd.s32 %v422, 536870912
    %v424 = vshrl.u32 %v423, 30
    %v425 = vshll.u32 %v424, 30
    %v426 = vsub.s32 %v422, %v425
    %vm427 = vcmp.lt.s32.totalorder %v426, 0
    %v428 = vsub.s32 0, %v426
    %v429 = vsel %vm427, %v428, %v426
    %v430 = vclz %v429
    %v431 = vsub.s32 %v430, 2
    %vm432 = vcmp.gt.s32.totalorder 0, %v431
    %v433 = vsel %vm432, 0, %v431
    %v434 = vsub.s32 32, %v433
    %v435 = vshll.u32 %v426, %v433
    %v436 = vshrl.u32 %v418, %v434
    %v437 = vor.u32 %v435, %v436
    %v438 = vsub.s32 4294967266, %v433
    %v439 = vadd.s32 %v438, 127
    %v440 = vshll.u32 %v439, 23
    %v441 = vor.u32 4788187, %v440
    %v442 = vand.u32 2147483647, %v441
    %v444 = vcvt.s32.f32 %v437
    %v445 = vmul.f32 %v444, %v442
    %v446 = vxor.u32 %v445, 2147483648
    %v447 = vsel %vm364, %v446, %v445
    %v448 = vsub.s32 4, %v424
    %v449 = vsel %vm364, %v448, %v424
    %v450 = vsel %vm363, %v130, %v447
    %v451 = vsel %vm363, 0, %v449
    %v452 = vcosq.f32.pop %v450
    %v453 = vsinq.f32.pop %v450
    %vm454 = vweird.f32 %v130
    %v455 = vadd.s32 %v451, 3
    %v456 = vand.u32 %v455, 3
    %vm457 = vcmp.lt.s32.totalorder %v456, 2
    %vm458 = vcmp.eq.s32.totalorder %v456, 0
    %v459 = vxor.u32 %v453, 2147483648
    %v460 = vsel %vm458, %v452, %v459
    %vm461 = vcmp.eq.s32.totalorder %v456, 2
    %v462 = vxor.u32 %v452, 2147483648
    %v463 = vsel %vm461, %v462, %v453
    %v464 = vsel %vm457, %v460, %v463
    %v465 = vsel %vm454, nan, %v464
    %v466 = vand.u32 2147483647, %v135
    %vm467 = vcmp.le.f32.partialorder %v466, 0.7853982
    %vm468 = vcmp.lt.s32.totalorder %v135, 0
    %v469 = vand.u32 %v135, 2139095040
    %v470 = vshrl.u32 %v469, 23
    %v471 = vsub.s32 %v470, 127
    %v472 = vand.u32 2147483647, %v135
    %v473 = vand.u32 %v472, 8388607
    %v474 = vor.u32 %v473, 8388608
    %v475 = vsub.s32 0, %v474
    %v476 = vadd.s32 %v471, 1
    %vm477 = vcmp.gt.s32.totalorder %v476, 0
    %v478 = vsel %vm477, %v476, 0
    %v479 = vshrl.u32 %v478, 5
    %v480 = vand.u32 %v478, 31
    %v481 = vsub.s32 32, %v480
    %v482 = vshrl.u32 683565275, %v481
    %v483 = vshll.u32 683565275, %v480
    %v484 = vshrl.u32 2475754826, %v481
    %v485 = vor.u32 %v483, %v484
    %v486 = vshll.u32 2475754826, %v480
    %v487 = vshrl.u32 2131351028, %v481
    %v488 = vor.u32 %v486, %v487
    %v489 = vshll.u32 2131351028, %v480
    %v490 = vshrl.u32 2102212464, %v481
    %v491 = vor.u32 %v489, %v490
    %v492 = vshll.u32 2102212464, %v480
    %v493 = vshrl.u32 920167782, %v481
    %v494 = vor.u32 %v492, %v493
    %v495 = vshll.u32 920167782, %v480
    %v496 = vshrl.u32 1326507024, %v481
    %v497 = vor.u32 %v495, %v496
    %vm498 = vcmp.lt.s32.totalorder %v479, 1
    %vm499 = vcmp.lt.s32.totalorder %v479, 2
    %vm500 = vcmp.lt.s32.totalorder %v479, 3
    %vm501 = vcmp.lt.s32.totalorder %v479, 4
    %v502 = vsel %vm498, %v482, %v485
    %v503 = vsel %vm501, %v491, 2102212464
    %v504 = vsel %vm500, %v488, %v503
    %v505 = vsel %vm499, %v502, %v504
    %v506 = vsel %vm498, %v485, %v488
    %v507 = vsel %vm501, %v494, 920167782
    %v508 = vsel %vm500, %v491, %v507
    %v509 = vsel %vm499, %v506, %v508
    %v510 = vsel %vm498, %v488, %v491
    %v511 = vsel %vm501, %v497, 1326507024
    %v512 = vsel %vm500, %v494, %v511
    %v513 = vsel %vm499, %v510, %v512
    %v514 = vshll.u32 %v474, 8
    %v515 = vmul.u32.u64.compose %v514, %v513
    %v516 = vextract.low.u32 %v515
    %v517 = vextract.high.u32 %v515
    %v518 = vmul.u32.u64.compose %v514, %v509
    %v519 = vextract.low.u32 %v518
    %v520 = vextract.high.u32 %v518
    %v521 = vmul.u32 %v514, %v505
    %v522 = vadd.s32 %v517, %v519
    %vm523 = vc.u32 %v517, %v519
    %v524 = vadd.s32 %v520, 1
    %v525 = vsel %vm523, %v524, %v520
    %v526 = vadd.s32 %v521, %v525
    %v527 = vadd.s32 %v526, 536870912
    %v528 = vshrl.u32 %v527, 30
    %v529 = vshll.u32 %v528, 30
    %v530 = vsub.s32 %v526, %v529
    %vm531 = vcmp.lt.s32.totalorder %v530, 0
    %v532 = vsub.s32 0, %v530
    %v533 = vsel %vm531, %v532, %v530
    %v534 = vclz %v533
    %v535 = vsub.s32 %v534, 2
    %vm536 = vcmp.gt.s32.totalorder 0, %v535
    %v537 = vsel %vm536, 0, %v535
    %v538 = vsub.s32 32, %v537
    %v539 = vshll.u32 %v530, %v537
    %v540 = vshrl.u32 %v522, %v538
    %v541 = vor.u32 %v539, %v540
    %v542 = vsub.s32 4294967266, %v537
    %v543 = vadd.s32 %v542, 127
    %v544 = vshll.u32 %v543, 23
    %v545 = vor.u32 4788187, %v544
    %v546 = vand.u32 2147483647, %v545
    %v548 = vcvt.s32.f32 %v541
    %v549 = vmul.f32 %v548, %v546
    %v550 = vxor.u32 %v549, 2147483648
    %v551 = vsel %vm468, %v550, %v549
    %v552 = vsub.s32 4, %v528
    %v553 = vsel %vm468, %v552, %v528
    %v554 = vsel %vm467, %v135, %v551
    %v555 = vsel %vm467, 0, %v553
    %v556 = vcosq.f32.pop %v554
    %v557 = vsinq.f32.pop %v554
    %vm558 = vweird.f32 %v135
    %v559 = vadd.s32 %v555, 3
    %v560 = vand.u32 %v559, 3
    %vm561 = vcmp.lt.s32.totalorder %v560, 2
    %vm562 = vcmp.eq.s32.totalorder %v560, 0
    %v563 = vxor.u32 %v557, 2147483648
    %v564 = vsel %vm562, %v556, %v563
    %vm565 = vcmp.eq.s32.totalorder %v560, 2
    %v566 = vxor.u32 %v556, 2147483648
    %v567 = vsel %vm565, %v566, %v557
    %v568 = vsel %vm561, %v564, %v567
    %v569 = vsel %vm558, nan, %v568
    %572 = vrot.lane.b32.xlu0 %v465, 16
    %v573 = vpop.permute.xlu0 %572
    %574 = vrot.lane.b32.xlu0 %v569, 16
    %v575 = vpop.permute.xlu0 %574
    %580 = vrot.lane.b32.xlu0 %v154, 16
    %v581 = vpop.permute.xlu0 %580
    %582 = vrot.lane.b32.xlu0 %v155, 16
    %v583 = vpop.permute.xlu0 %582
    %vm586 = vcmask 130048
    %v587 = vsel %vm586, %v258, %v573
    %v588 = vsel %vm586, %v361, %v575
    %v589 = vsel %vm56, %v587, %v581
    %v590 = vsel %vm56, %v588, %v583
    %vm591 = vcmask 523264
    %592 = vst.msk [vmem:[#allocation7] sm:$0xff] %vm591, %v589
    %593 = vst.msk [vmem:[#allocation7 + $0x8] sm:$0xff] %vm591, %v590
    // Predicated region
    $region22: #{tpu_custom_call.1} parent=1 // pred_check
      _
    $region23: #{tpu_custom_call.1} parent=1 // pred_check_branch
      %595 = sbr.rel (0) target = $region25
    $region24: #{tpu_custom_call.1} parent=1 // pred_region
      %s597 = ssub.s32 256, 256
      %598 = vsyncadd [#allocation4], %s597
      %s599 = sshll.u32 [#allocation7], 4
      %s600 = int_to_ptr.vmem [resolvable:$true] %s599
      %605 = dma.vmem_to_hbm [thread:$0]  %s600, 256, %s3, [#allocation4], 128, 128, 8
    $region25: #{tpu_custom_call.1} parent=1 // pred_fallthru
      _
    // Predicated region
    $region26: #{tpu_custom_call.1} parent=1 // pred_check
      _
    $region27: #{tpu_custom_call.1} parent=1 // pred_check_branch
      %607 = sbr.rel (0) target = $region29
    $region28: #{tpu_custom_call.1} parent=1 // pred_region
      %608 = dma.done [#allocation4], 256
    $region29: #{tpu_custom_call.1} parent=1 // pred_fallthru
      _
    %609 = vsyncpa [#allocation3], 1
    %610 = vsyncpa [#allocation6], 1
    %611 = vsyncpa [#allocation4], 1

</llo_original>
